<compile_context>
chip_gen: v6e
topology: v6e:2x2x1
jax: 0.10.0
libtpu: 0.0.40
codegen_flags: <defaults>
</compile_context>

<pallas_src>
import math

import jax
import jax.numpy as jnp
from jax.experimental import pallas as pl
from jax.experimental.pallas import tpu as pltpu

LAYER_NORM_EPS = 1e-12
VOCAB = 768  # decoder output size is hard-coded to 768 in the module


def _round_up(n, m):
    return ((n + m - 1) // m) * m


def _vmem_cap_bytes():
    try:
        return int(pltpu.get_tpu_info().vmem_capacity_bytes)
    except Exception:
        return 64 << 20  # conservative: v7x per-TensorCore VMEM


def _make_kernel(use_tanh_gelu):
    def kernel(x_ref, w1_ref, p_ref, w2_ref, b2_ref, o_ref):
        # x_ref:  (TM, H)      row tile (native dtype)
        # w1_ref: (H, H)       dense weight, (in, out) layout (native dtype)
        # p_ref:  (3, H)       packed [b1, gamma, beta]
        # w2_ref: (H, VOCAB)   decoder weight, (in, out) layout (native dtype)
        # b2_ref: (1, VOCAB)   decoder bias
        # o_ref:  (TM, VOCAB)
        p = p_ref[...].astype(jnp.float32)  # tiny (3, H)

        # dense: native-dtype operands into the MXU, f32 accumulation
        h = jnp.dot(x_ref[...], w1_ref[...], preferred_element_type=jnp.float32)
        h = h + p[0]

        if use_tanh_gelu:
            # tanh approximation: transcendental runs on the EUP (free slot on
            # v6e/v7x); differs from exact erf at ~1e-3 relative.
            c = math.sqrt(2.0 / math.pi)
            h = 0.5 * h * (1.0 + jnp.tanh(c * (h + 0.044715 * h * h * h)))
        else:
            # exact gelu: x * 0.5 * (1 + erf(x / sqrt(2))) -- matches PyTorch
            h = h * 0.5 * (1.0 + jax.lax.erf(h * (1.0 / math.sqrt(2.0))))

        # LayerNorm over the last dim (biased variance, like nn.LayerNorm), f32.
        # One-pass variance E[h^2] - mean^2 saves a full (TM,H) VPU pass.
        mean = jnp.mean(h, axis=-1, keepdims=True)
        var = jnp.mean(h * h, axis=-1, keepdims=True) - mean * mean
        h = (h - mean) * jax.lax.rsqrt(var + LAYER_NORM_EPS)
        h = h * p[1] + p[2]

        # decoder: cast back to the weight dtype (bf16 -> full-rate MXU),
        # f32 accumulation.
        out = jnp.dot(h.astype(w2_ref.dtype), w2_ref[...],
                      preferred_element_type=jnp.float32)
        out = out + b2_ref[...].astype(jnp.float32)
        o_ref[...] = out.astype(o_ref.dtype)

    return kernel


def visual_lm_prediction_head(x, w1, b1, gamma, beta, w2, b2, *,
                              tile_m=512, use_tanh_gelu=False):
    """x: (B, S, H); weights in (in, out) layout. Returns (B, S, VOCAB)."""
    B, S, H = x.shape
    N = B * S
    x2 = x.reshape(N, H)                       # view, no copy
    params = jnp.stack([b1, gamma, beta], axis=0)   # (3, H) - one DMA
    b2_2 = b2.reshape(1, VOCAB)

    # Row tile: multiple of 128 (fully populated MXU passes, amortizes the
    # ~0.35us/step grid overhead). When there is enough work, clamp so the
    # grid has >= 2 steps so both v7x TensorCores get a share of the
    # 'parallel' axis.
    tm_req = max(128, _round_up(int(tile_m), 128))
    if N >= 256:
        tm = min(tm_req, _round_up(pl.cdiv(N, 2), 128))
    else:
        tm = min(tm_req, _round_up(N, 8))
    grid = (pl.cdiv(N, tm),)                   # last block may be partial

    # VMEM budget: resident weights + double-buffered row tiles + in-kernel
    # f32 intermediates, capped per-generation below physical capacity.
    x_b = jnp.dtype(x.dtype).itemsize
    w1_b = jnp.dtype(w1.dtype).itemsize
    w2_b = jnp.dtype(w2.dtype).itemsize
    p_b = jnp.dtype(params.dtype).itemsize

    def _budget(weight_bufs):
        w_bytes = weight_bufs * (H * H * w1_b + H * VOCAB * w2_b
                                 + 3 * H * p_b + VOCAB * p_b)
        io_bytes = 2 * (tm * H * x_b + tm * VOCAB * x_b)       # streamed tiles
        tmp_bytes = tm * H * 4 + tm * H * w2_b + tm * VOCAB * 4  # f32 h, cast h, f32 out
        return w_bytes + io_bytes + tmp_bytes + (4 << 20)      # compiler scratch headroom

    cap = _vmem_cap_bytes()
    ceiling = max(cap - (8 << 20), 16 << 20)   # e.g. 56 MiB on v7x, 120 MiB on v6e

    kernel = _make_kernel(use_tanh_gelu)

    def _call(single_buffer_weights):
        const_kw = ({'pipeline_mode': pl.Buffered(1)}
                    if single_buffer_weights else {})
        wbufs = 1 if single_buffer_weights else 2
        vmem_limit = int(min(max(_budget(wbufs), 32 << 20), ceiling))
        return pl.pallas_call(
            kernel,
            out_shape=jax.ShapeDtypeStruct((N, VOCAB), x.dtype),
            grid_spec=pltpu.PrefetchScalarGridSpec(
                num_scalar_prefetch=0,
                grid=grid,
                in_specs=[
                    pl.BlockSpec((tm, H), lambda i: (i, 0)),               # x rows
                    pl.BlockSpec((H, H), lambda i: (0, 0), **const_kw),    # W1 (resident)
                    pl.BlockSpec((3, H), lambda i: (0, 0), **const_kw),    # [b1,gamma,beta]
                    pl.BlockSpec((H, VOCAB), lambda i: (0, 0), **const_kw),  # W2 (resident)
                    pl.BlockSpec((1, VOCAB), lambda i: (0, 0), **const_kw),  # b2
                ],
                out_specs=pl.BlockSpec((tm, VOCAB), lambda i: (i, 0)),
            ),
            compiler_params=pltpu.CompilerParams(
                dimension_semantics=("parallel",),
                vmem_limit_bytes=vmem_limit),
        )(x2, w1, params, w2, b2_2)

    try:
        out = _call(True)
    except Exception:
        # Fallback for jax versions that reject Buffered(1) on constant-index
        # blocks: plain (double-buffered) specs, same semantics.
        out = _call(False)

    return out.reshape(B, S, VOCAB)


def _reference(x, w1, b1, gamma, beta, w2, b2, use_tanh_gelu=False):
    x = x.astype(jnp.float32)
    h = jnp.einsum("bsh,hk->bsk", x, w1.astype(jnp.float32)) + b1.astype(jnp.float32)
    if use_tanh_gelu:
        c = math.sqrt(2.0 / math.pi)
        h = 0.5 * h * (1.0 + jnp.tanh(c * (h + 0.044715 * h ** 3)))
    else:
        h = h * 0.5 * (1.0 + jax.lax.erf(h / jnp.sqrt(2.0)))
    mean = jnp.mean(h, axis=-1, keepdims=True)
    var = jnp.mean((h - mean) ** 2, axis=-1, keepdims=True)
    h = ((h - mean) * jax.lax.rsqrt(var + LAYER_NORM_EPS)
         * gamma.astype(jnp.float32) + beta.astype(jnp.float32))
    return (jnp.einsum("bsh,hv->bsv", h, w2.astype(jnp.float32))
            + b2.astype(jnp.float32))


if __name__ == "__main__":
    key = jax.random.PRNGKey(0)

    # --- Test 1: small f32 shapes matching the module config (hidden=32) ---
    B, S, H = 2, 8, 32
    kx, kw1, kb1, kw2 = jax.random.split(key, 4)
    x = jax.random.normal(kx, (B, S, H), dtype=jnp.float32)
    w1 = jax.random.normal(kw1, (H, H), dtype=jnp.float32) * 0.02
    b1 = jax.random.normal(kb1, (H,), dtype=jnp.float32) * 0.02
    gamma = jnp.ones((H,), dtype=jnp.float32)
    beta = jnp.zeros((H,), dtype=jnp.float32)
    w2 = jax.random.normal(kw2, (H, VOCAB), dtype=jnp.float32) * 0.02
    b2 = jnp.zeros((VOCAB,), dtype=jnp.float32)

    out = jax.block_until_ready(
        visual_lm_prediction_head(x, w1, b1, gamma, beta, w2, b2))
    ref = _reference(x, w1, b1, gamma, beta, w2, b2)
    assert out.shape == (B, S, VOCAB)
    assert jnp.allclose(out, ref, atol=1e-3, rtol=1e-3), "f32 mismatch vs reference"

    # --- Test 2: bf16 operands, non-multiple row count -> partial last block,
    #             grid >= 2 (exercises two-TC split, no host-side padding) ---
    B2, S2, H2 = 4, 125, 128   # N = 500 -> tm = 256, grid = 2 (last block partial)
    k2 = jax.random.split(key, 8)
    xb = jax.random.normal(k2[0], (B2, S2, H2), dtype=jnp.float32).astype(jnp.bfloat16)
    w1b = (jax.random.normal(k2[1], (H2, H2), dtype=jnp.float32) * 0.02).astype(jnp.bfloat16)
    b1b = (jax.random.normal(k2[2], (H2,), dtype=jnp.float32) * 0.02).astype(jnp.bfloat16)
    gb = jnp.ones((H2,), dtype=jnp.bfloat16)
    bb = jnp.zeros((H2,), dtype=jnp.bfloat16)
    w2b = (jax.random.normal(k2[3], (H2, VOCAB), dtype=jnp.float32) * 0.02).astype(jnp.bfloat16)
    b2b = jnp.zeros((VOCAB,), dtype=jnp.bfloat16)

    outb = jax.block_until_ready(
        visual_lm_prediction_head(xb, w1b, b1b, gb, bb, w2b, b2b, tile_m=512))
    refb = _reference(xb, w1b, b1b, gb, bb, w2b, b2b)
    assert outb.shape == (B2, S2, VOCAB)
    assert jnp.all(jnp.isfinite(outb.astype(jnp.float32)))
    assert jnp.allclose(outb.astype(jnp.float32), refb, atol=5e-2, rtol=5e-2), \
        "bf16 mismatch vs reference"

    # --- Test 3: tanh-GELU fast path (v6e/v7x VALU relief) compiles & matches
    #             its own tanh reference ---
    outt = jax.block_until_ready(
        visual_lm_prediction_head(x, w1, b1, gamma, beta, w2, b2,
                                  use_tanh_gelu=True))
    reft = _reference(x, w1, b1, gamma, beta, w2, b2, use_tanh_gelu=True)
    assert jnp.allclose(outt, reft, atol=1e-3, rtol=1e-3), "tanh-gelu mismatch"

    print("KERNEL_OK")
</pallas_src>

<mosaic_0001>
module attributes {stable_mosaic.version = 11 : i64} {
  func.func @kernel(%arg0: i32, %arg1: memref<16x32xf32, #tpu.memory_space<vmem>>, %arg2: memref<32x32xf32, #tpu.memory_space<vmem>>, %arg3: memref<3x32xf32, #tpu.memory_space<vmem>>, %arg4: memref<32x768xf32, #tpu.memory_space<vmem>>, %arg5: memref<1x768xf32, #tpu.memory_space<vmem>>, %arg6: memref<16x768xf32, #tpu.memory_space<vmem>>) attributes {dimension_semantics = [#tpu.dimension_semantics<parallel>], iteration_bounds = array<i64: 1>, scalar_prefetch = 0 : i64, scratch_operands = 0 : i64, tpu.core_type = #tpu.core_type<tc>, window_params = [{transform_indices = @transform_0, window_bounds = array<i64: 16, 32>}, {pipeline_mode = #tpu.pipeline_mode<synchronous>, transform_indices = @transform_1, window_bounds = array<i64: 32, 32>}, {pipeline_mode = #tpu.pipeline_mode<synchronous>, transform_indices = @transform_2, window_bounds = array<i64: 3, 32>}, {pipeline_mode = #tpu.pipeline_mode<synchronous>, transform_indices = @transform_3, window_bounds = array<i64: 32, 768>}, {pipeline_mode = #tpu.pipeline_mode<synchronous>, transform_indices = @transform_4, window_bounds = array<i64: 1, 768>}, {transform_indices = @transform_5, window_bounds = array<i64: 16, 768>}]} {
    %c0 = arith.constant 0 : index
    %c0_0 = arith.constant 0 : index
    %0 = vector.load %arg3[%c0, %c0_0] : memref<3x32xf32, #tpu.memory_space<vmem>>, vector<3x32xf32>
    %c0_1 = arith.constant 0 : index
    %c0_2 = arith.constant 0 : index
    %1 = vector.load %arg1[%c0_1, %c0_2] : memref<16x32xf32, #tpu.memory_space<vmem>>, vector<16x32xf32>
    %c0_3 = arith.constant 0 : index
    %c0_4 = arith.constant 0 : index
    %2 = vector.load %arg2[%c0_3, %c0_4] : memref<32x32xf32, #tpu.memory_space<vmem>>, vector<32x32xf32>
    %cst = arith.constant dense<0.000000e+00> : vector<16x32xf32>
    %3 = tpu.matmul %1, %2, %cst {dimension_numbers = #tpu.dot_dimension_numbers<[1], [0], [0], [1], [0, 0, 1, 1], [], []>} : vector<16x32xf32>, vector<32x32xf32>, vector<16x32xf32> -> vector<16x32xf32>
    %4 = vector.extract_strided_slice %0 {offsets = [0, 0], sizes = [1, 32], strides = [1, 1]} : vector<3x32xf32> to vector<1x32xf32>
    %5 = vector.shape_cast %4 : vector<1x32xf32> to vector<32xf32>
    %6 = vector.shape_cast %5 : vector<32xf32> to vector<1x32xf32>
    %7 = vector.broadcast %6 : vector<1x32xf32> to vector<16x32xf32>
    %8 = arith.addf %3, %7 : vector<16x32xf32>
    %cst_5 = arith.constant 5.000000e-01 : f32
    %9 = vector.broadcast %cst_5 : f32 to vector<16x32xf32>
    %10 = arith.mulf %8, %9 : vector<16x32xf32>
    %cst_6 = arith.constant 0.707106769 : f32
    %11 = vector.broadcast %cst_6 : f32 to vector<16x32xf32>
    %12 = arith.mulf %8, %11 : vector<16x32xf32>
    %13 = math.erf %12 : vector<16x32xf32>
    %cst_7 = arith.constant 1.000000e+00 : f32
    %14 = vector.broadcast %cst_7 : f32 to vector<16x32xf32>
    %15 = arith.addf %14, %13 : vector<16x32xf32>
    %16 = arith.mulf %10, %15 : vector<16x32xf32>
    %cst_8 = arith.constant dense<0.000000e+00> : vector<16xf32>
    %17 = vector.multi_reduction <add>, %16, %cst_8 [1] : vector<16x32xf32> to vector<16xf32>
    %18 = vector.shape_cast %17 : vector<16xf32> to vector<16x1xf32>
    %cst_9 = arith.constant 3.200000e+01 : f32
    %19 = vector.broadcast %cst_9 : f32 to vector<16x1xf32>
    %20 = arith.divf %18, %19 : vector<16x1xf32>
    %21 = arith.mulf %16, %16 : vector<16x32xf32>
    %cst_10 = arith.constant dense<0.000000e+00> : vector<16xf32>
    %22 = vector.multi_reduction <add>, %21, %cst_10 [1] : vector<16x32xf32> to vector<16xf32>
    %23 = vector.shape_cast %22 : vector<16xf32> to vector<16x1xf32>
    %cst_11 = arith.constant 3.200000e+01 : f32
    %24 = vector.broadcast %cst_11 : f32 to vector<16x1xf32>
    %25 = arith.divf %23, %24 : vector<16x1xf32>
    %26 = arith.mulf %20, %20 : vector<16x1xf32>
    %27 = arith.subf %25, %26 : vector<16x1xf32>
    %28 = vector.broadcast %20 : vector<16x1xf32> to vector<16x32xf32>
    %29 = arith.subf %16, %28 : vector<16x32xf32>
    %cst_12 = arith.constant 9.99999996E-13 : f32
    %30 = vector.broadcast %cst_12 : f32 to vector<16x1xf32>
    %31 = arith.addf %27, %30 : vector<16x1xf32>
    %32 = math.rsqrt %31 : vector<16x1xf32>
    %33 = vector.broadcast %32 : vector<16x1xf32> to vector<16x32xf32>
    %34 = arith.mulf %29, %33 : vector<16x32xf32>
    %35 = vector.extract_strided_slice %0 {offsets = [1, 0], sizes = [1, 32], strides = [1, 1]} : vector<3x32xf32> to vector<1x32xf32>
    %36 = vector.shape_cast %35 : vector<1x32xf32> to vector<32xf32>
    %37 = vector.shape_cast %36 : vector<32xf32> to vector<1x32xf32>
    %38 = vector.broadcast %37 : vector<1x32xf32> to vector<16x32xf32>
    %39 = arith.mulf %34, %38 : vector<16x32xf32>
    %40 = vector.extract_strided_slice %0 {offsets = [2, 0], sizes = [1, 32], strides = [1, 1]} : vector<3x32xf32> to vector<1x32xf32>
    %41 = vector.shape_cast %40 : vector<1x32xf32> to vector<32xf32>
    %42 = vector.shape_cast %41 : vector<32xf32> to vector<1x32xf32>
    %43 = vector.broadcast %42 : vector<1x32xf32> to vector<16x32xf32>
    %44 = arith.addf %39, %43 : vector<16x32xf32>
    %c0_13 = arith.constant 0 : index
    %c0_14 = arith.constant 0 : index
    %45 = vector.load %arg4[%c0_13, %c0_14] : memref<32x768xf32, #tpu.memory_space<vmem>>, vector<32x768xf32>
    %cst_15 = arith.constant dense<0.000000e+00> : vector<16x768xf32>
    %46 = tpu.matmul %44, %45, %cst_15 {dimension_numbers = #tpu.dot_dimension_numbers<[1], [0], [0], [1], [0, 0, 1, 1], [], []>} : vector<16x32xf32>, vector<32x768xf32>, vector<16x768xf32> -> vector<16x768xf32>
    %c0_16 = arith.constant 0 : index
    %c0_17 = arith.constant 0 : index
    %47 = vector.load %arg5[%c0_16, %c0_17] : memref<1x768xf32, #tpu.memory_space<vmem>>, vector<1x768xf32>
    %48 = vector.broadcast %47 : vector<1x768xf32> to vector<16x768xf32>
    %49 = arith.addf %46, %48 : vector<16x768xf32>
    %c0_18 = arith.constant 0 : index
    %c0_19 = arith.constant 0 : index
    %50 = vector.load %arg6[%c0_18, %c0_19] : memref<16x768xf32, #tpu.memory_space<vmem>>, vector<16x768xf32>
    tpu.vector_store %arg6[%c0_18, %c0_19], %49 {strides = array<i32>} : memref<16x768xf32, #tpu.memory_space<vmem>>, vector<16x768xf32>,
    return
  }
  func.func @transform_0(%arg0: i32) -> (i32, i32) {
    %c0_i32 = arith.constant 0 : i32
    %c0_i32_0 = arith.constant 0 : i32
    return %arg0, %c0_i32 : i32, i32
  }
  func.func @transform_1(%arg0: i32) -> (i32, i32) {
    %c0_i32 = arith.constant 0 : i32
    %c0_i32_0 = arith.constant 0 : i32
    %c0_i32_1 = arith.constant 0 : i32
    return %c0_i32, %c0_i32_0 : i32, i32
  }
  func.func @transform_2(%arg0: i32) -> (i32, i32) {
    %c0_i32 = arith.constant 0 : i32
    %c0_i32_0 = arith.constant 0 : i32
    %c0_i32_1 = arith.constant 0 : i32
    return %c0_i32, %c0_i32_0 : i32, i32
  }
  func.func @transform_3(%arg0: i32) -> (i32, i32) {
    %c0_i32 = arith.constant 0 : i32
    %c0_i32_0 = arith.constant 0 : i32
    %c0_i32_1 = arith.constant 0 : i32
    return %c0_i32, %c0_i32_0 : i32, i32
  }
  func.func @transform_4(%arg0: i32) -> (i32, i32) {
    %c0_i32 = arith.constant 0 : i32
    %c0_i32_0 = arith.constant 0 : i32
    %c0_i32_1 = arith.constant 0 : i32
    return %c0_i32, %c0_i32_0 : i32, i32
  }
  func.func @transform_5(%arg0: i32) -> (i32, i32) {
    %c0_i32 = arith.constant 0 : i32
    %c0_i32_0 = arith.constant 0 : i32
    return %arg0, %c0_i32 : i32, i32
  }
}

module attributes {stable_mosaic.version = 11 : i64} {
  func.func @kernel(%arg0: i32, %arg1: memref<16x32xf32, #tpu.memory_space<vmem>>, %arg2: memref<32x32xf32, #tpu.memory_space<vmem>>, %arg3: memref<3x32xf32, #tpu.memory_space<vmem>>, %arg4: memref<32x768xf32, #tpu.memory_space<vmem>>, %arg5: memref<1x768xf32, #tpu.memory_space<vmem>>, %arg6: memref<16x768xf32, #tpu.memory_space<vmem>>) attributes {dimension_semantics = [#tpu.dimension_semantics<parallel>], iteration_bounds = array<i64: 1>, scalar_prefetch = 0 : i64, scratch_operands = 0 : i64, tpu.core_type = #tpu.core_type<tc>, window_params = [{transform_indices = @transform_0, window_bounds = array<i64: 16, 32>}, {pipeline_mode = #tpu.pipeline_mode<synchronous>, transform_indices = @transform_1, window_bounds = array<i64: 32, 32>}, {pipeline_mode = #tpu.pipeline_mode<synchronous>, transform_indices = @transform_2, window_bounds = array<i64: 3, 32>}, {pipeline_mode = #tpu.pipeline_mode<synchronous>, transform_indices = @transform_3, window_bounds = array<i64: 32, 768>}, {pipeline_mode = #tpu.pipeline_mode<synchronous>, transform_indices = @transform_4, window_bounds = array<i64: 1, 768>}, {transform_indices = @transform_5, window_bounds = array<i64: 16, 768>}]} {
    %c0 = arith.constant 0 : index
    %c0_0 = arith.constant 0 : index
    %0 = vector.load %arg3[%c0, %c0_0] : memref<3x32xf32, #tpu.memory_space<vmem>>, vector<3x32xf32>
    %c0_1 = arith.constant 0 : index
    %c0_2 = arith.constant 0 : index
    %1 = vector.load %arg1[%c0_1, %c0_2] : memref<16x32xf32, #tpu.memory_space<vmem>>, vector<16x32xf32>
    %c0_3 = arith.constant 0 : index
    %c0_4 = arith.constant 0 : index
    %2 = vector.load %arg2[%c0_3, %c0_4] : memref<32x32xf32, #tpu.memory_space<vmem>>, vector<32x32xf32>
    %cst = arith.constant dense<0.000000e+00> : vector<16x32xf32>
    %3 = tpu.matmul %1, %2, %cst {dimension_numbers = #tpu.dot_dimension_numbers<[1], [0], [0], [1], [0, 0, 1, 1], [], []>} : vector<16x32xf32>, vector<32x32xf32>, vector<16x32xf32> -> vector<16x32xf32>
    %4 = vector.extract_strided_slice %0 {offsets = [0, 0], sizes = [1, 32], strides = [1, 1]} : vector<3x32xf32> to vector<1x32xf32>
    %5 = vector.shape_cast %4 : vector<1x32xf32> to vector<32xf32>
    %6 = vector.shape_cast %5 : vector<32xf32> to vector<1x32xf32>
    %7 = vector.broadcast %6 : vector<1x32xf32> to vector<16x32xf32>
    %8 = arith.addf %3, %7 : vector<16x32xf32>
    %cst_5 = arith.constant 5.000000e-01 : f32
    %9 = vector.broadcast %cst_5 : f32 to vector<16x32xf32>
    %10 = arith.mulf %8, %9 : vector<16x32xf32>
    %cst_6 = arith.constant 0.707106769 : f32
    %11 = vector.broadcast %cst_6 : f32 to vector<16x32xf32>
    %12 = arith.mulf %8, %11 : vector<16x32xf32>
    %13 = math.erf %12 : vector<16x32xf32>
    %cst_7 = arith.constant 1.000000e+00 : f32
    %14 = vector.broadcast %cst_7 : f32 to vector<16x32xf32>
    %15 = arith.addf %14, %13 : vector<16x32xf32>
    %16 = arith.mulf %10, %15 : vector<16x32xf32>
    %cst_8 = arith.constant dense<0.000000e+00> : vector<16xf32>
    %17 = vector.multi_reduction <add>, %16, %cst_8 [1] : vector<16x32xf32> to vector<16xf32>
    %18 = vector.shape_cast %17 : vector<16xf32> to vector<16x1xf32>
    %cst_9 = arith.constant 3.200000e+01 : f32
    %19 = vector.broadcast %cst_9 : f32 to vector<16x1xf32>
    %20 = arith.divf %18, %19 : vector<16x1xf32>
    %21 = arith.mulf %16, %16 : vector<16x32xf32>
    %cst_10 = arith.constant dense<0.000000e+00> : vector<16xf32>
    %22 = vector.multi_reduction <add>, %21, %cst_10 [1] : vector<16x32xf32> to vector<16xf32>
    %23 = vector.shape_cast %22 : vector<16xf32> to vector<16x1xf32>
    %cst_11 = arith.constant 3.200000e+01 : f32
    %24 = vector.broadcast %cst_11 : f32 to vector<16x1xf32>
    %25 = arith.divf %23, %24 : vector<16x1xf32>
    %26 = arith.mulf %20, %20 : vector<16x1xf32>
    %27 = arith.subf %25, %26 : vector<16x1xf32>
    %28 = vector.broadcast %20 : vector<16x1xf32> to vector<16x32xf32>
    %29 = arith.subf %16, %28 : vector<16x32xf32>
    %cst_12 = arith.constant 9.99999996E-13 : f32
    %30 = vector.broadcast %cst_12 : f32 to vector<16x1xf32>
    %31 = arith.addf %27, %30 : vector<16x1xf32>
    %32 = math.rsqrt %31 : vector<16x1xf32>
    %33 = vector.broadcast %32 : vector<16x1xf32> to vector<16x32xf32>
    %34 = arith.mulf %29, %33 : vector<16x32xf32>
    %35 = vector.extract_strided_slice %0 {offsets = [1, 0], sizes = [1, 32], strides = [1, 1]} : vector<3x32xf32> to vector<1x32xf32>
    %36 = vector.shape_cast %35 : vector<1x32xf32> to vector<32xf32>
    %37 = vector.shape_cast %36 : vector<32xf32> to vector<1x32xf32>
    %38 = vector.broadcast %37 : vector<1x32xf32> to vector<16x32xf32>
    %39 = arith.mulf %34, %38 : vector<16x32xf32>
    %40 = vector.extract_strided_slice %0 {offsets = [2, 0], sizes = [1, 32], strides = [1, 1]} : vector<3x32xf32> to vector<1x32xf32>
    %41 = vector.shape_cast %40 : vector<1x32xf32> to vector<32xf32>
    %42 = vector.shape_cast %41 : vector<32xf32> to vector<1x32xf32>
    %43 = vector.broadcast %42 : vector<1x32xf32> to vector<16x32xf32>
    %44 = arith.addf %39, %43 : vector<16x32xf32>
    %c0_13 = arith.constant 0 : index
    %c0_14 = arith.constant 0 : index
    %45 = vector.load %arg4[%c0_13, %c0_14] : memref<32x768xf32, #tpu.memory_space<vmem>>, vector<32x768xf32>
    %cst_15 = arith.constant dense<0.000000e+00> : vector<16x768xf32>
    %46 = tpu.matmul %44, %45, %cst_15 {dimension_numbers = #tpu.dot_dimension_numbers<[1], [0], [0], [1], [0, 0, 1, 1], [], []>} : vector<16x32xf32>, vector<32x768xf32>, vector<16x768xf32> -> vector<16x768xf32>
    %c0_16 = arith.constant 0 : index
    %c0_17 = arith.constant 0 : index
    %47 = vector.load %arg5[%c0_16, %c0_17] : memref<1x768xf32, #tpu.memory_space<vmem>>, vector<1x768xf32>
    %48 = vector.broadcast %47 : vector<1x768xf32> to vector<16x768xf32>
    %49 = arith.addf %46, %48 : vector<16x768xf32>
    %c0_18 = arith.constant 0 : index
    %c0_19 = arith.constant 0 : index
    %50 = vector.load %arg6[%c0_18, %c0_19] : memref<16x768xf32, #tpu.memory_space<vmem>>, vector<16x768xf32>
    tpu.vector_store %arg6[%c0_18, %c0_19], %49 {strides = array<i32>} : memref<16x768xf32, #tpu.memory_space<vmem>>, vector<16x768xf32>,
    return
  }
  func.func @transform_0(%arg0: i32) -> (i32, i32) {
    %c0_i32 = arith.constant 0 : i32
    %c0_i32_0 = arith.constant 0 : i32
    return %arg0, %c0_i32 : i32, i32
  }
  func.func @transform_1(%arg0: i32) -> (i32, i32) {
    %c0_i32 = arith.constant 0 : i32
    %c0_i32_0 = arith.constant 0 : i32
    %c0_i32_1 = arith.constant 0 : i32
    return %c0_i32, %c0_i32_0 : i32, i32
  }
  func.func @transform_2(%arg0: i32) -> (i32, i32) {
    %c0_i32 = arith.constant 0 : i32
    %c0_i32_0 = arith.constant 0 : i32
    %c0_i32_1 = arith.constant 0 : i32
    return %c0_i32, %c0_i32_0 : i32, i32
  }
  func.func @transform_3(%arg0: i32) -> (i32, i32) {
    %c0_i32 = arith.constant 0 : i32
    %c0_i32_0 = arith.constant 0 : i32
    %c0_i32_1 = arith.constant 0 : i32
    return %c0_i32, %c0_i32_0 : i32, i32
  }
  func.func @transform_4(%arg0: i32) -> (i32, i32) {
    %c0_i32 = arith.constant 0 : i32
    %c0_i32_0 = arith.constant 0 : i32
    %c0_i32_1 = arith.constant 0 : i32
    return %c0_i32, %c0_i32_0 : i32, i32
  }
  func.func @transform_5(%arg0: i32) -> (i32, i32) {
    %c0_i32 = arith.constant 0 : i32
    %c0_i32_0 = arith.constant 0 : i32
    return %arg0, %c0_i32 : i32, i32
  }
}

</mosaic_0001>

<llo_original>
// kernel: tpu_custom_call.1
$region0: #{tpu_custom_call.1}
  #allocation0 [shape = 'u32[]', space=smem, size = 0x4, offset = 0x4, fixed_abs, tag = 'smem constant byte address 0x4 - core index']
  #allocation1 [shape = 'u32[144,128]{1,0:T(1,128)}', space=vmem, size = 0x12000, scoped, tag = 'internal scratch']
  %s0 = inlined_call_operand.hbm [shape: f32[16,32], index: 0, kind: input, shape index: {}]
  %s1 = inlined_call_operand.hbm [shape: f32[32,32], index: 1, kind: input, shape index: {}]
  %s2 = inlined_call_operand.hbm [shape: f32[3,32], index: 2, kind: input, shape index: {}]
  %s3 = inlined_call_operand.hbm [shape: f32[32,768], index: 3, kind: input, shape index: {}]
  %s4 = inlined_call_operand.vmem [shape: f32[1,768], index: 4, kind: input, shape index: {}]
  %s5 = inlined_call_operand.hbm [shape: f32[16,768], index: 5, kind: output, shape index: {}]
  %s6 = sld [smem:[#allocation0]]
  $region46: #{tpu_custom_call.1} parent=0
    _
  %s8 = ssub.s32 1, %s6
  %s9 = scalar_select 0, %s8, %s6
  $region1: #{tpu_custom_call.1} parent=0
    #allocation2 [shape = 'u8[8192]{0}', space=vmem, size = 0x2000, scoped, tag = 'input window, operand 0, single buffered']
    #allocation3 [shape = 's32[1]{0}', space=sflag, size = 0x4, scoped, tag = 'scoped memory for tpu_custom_call.1']
    #allocation4 [shape = 's32[1]{0}', space=sflag, size = 0x4, scoped, tag = 'scoped memory for tpu_custom_call.1']
    #allocation5 [shape = 'u8[16384]{0}', space=vmem, size = 0x4000, scoped, tag = 'input window, operand 1, single buffered']
    #allocation6 [shape = 's32[1]{0}', space=sflag, size = 0x4, scoped, tag = 'scoped memory for tpu_custom_call.1']
    #allocation7 [shape = 'u8[2048]{0}', space=vmem, size = 0x800, scoped, tag = 'input window, operand 2, single buffered']
    #allocation8 [shape = 'u8[98304]{0}', space=vmem, size = 0x18000, scoped, tag = 'input window, operand 3, single buffered']
    #allocation9 [shape = 's32[1]{0}', space=sflag, size = 0x4, scoped, tag = 'scoped memory for tpu_custom_call.1']
    #allocation10 [shape = 'u8[49152]{0}', space=vmem, size = 0xc000, scoped, tag = 'output window, operand 0, single buffered']
    %10 = vsyncpa [#allocation3], 0
    %11 = vsyncpa [#allocation6], 0
    %12 = vsyncpa [#allocation9], 0
    %13 = vsyncpa [#allocation4], 0
    // Predicated region
    $region2: #{tpu_custom_call.1} parent=1 // pred_check
      _
    $region3: #{tpu_custom_call.1} parent=1 // pred_check_branch
      %15 = sbr.rel (0) target = $region5
    $region4: #{tpu_custom_call.1} parent=1 // pred_region
      %s17 = ssub.s32 256, 256
      %18 = vsyncadd [#allocation3], %s17
      %s19 = sshll.u32 [#allocation2], 4
      %s20 = int_to_ptr.vmem [resolvable:$true] %s19
      %25 = dma.hbm_to_vmem [thread:$0]  %s0, 256, %s20, [#allocation3], 128, 128, 8
    $region5: #{tpu_custom_call.1} parent=1 // pred_fallthru
      _
    // Predicated region
    $region6: #{tpu_custom_call.1} parent=1 // pred_check
      _
    $region7: #{tpu_custom_call.1} parent=1 // pred_check_branch
      %27 = sbr.rel (0) target = $region9
    $region8: #{tpu_custom_call.1} parent=1 // pred_region
      %s29 = ssub.s32 512, 512
      %30 = vsyncadd [#allocation6], %s29
      %s31 = sshll.u32 [#allocation5], 4
      %s32 = int_to_ptr.vmem [resolvable:$true] %s31
      %37 = dma.hbm_to_vmem [thread:$0]  %s1, 512, %s32, [#allocation6], 128, 128, 8
    $region9: #{tpu_custom_call.1} parent=1 // pred_fallthru
      _
    // Predicated region
    $region10: #{tpu_custom_call.1} parent=1 // pred_check
      _
    $region11: #{tpu_custom_call.1} parent=1 // pred_check_branch
      %39 = sbr.rel (0) target = $region13
    $region12: #{tpu_custom_call.1} parent=1 // pred_region
      %s41 = ssub.s32 64, 64
      %42 = vsyncadd [#allocation6], %s41
      %s44 = sshll.u32 [#allocation7], 4
      %s45 = int_to_ptr.vmem [resolvable:$true] %s44
      %47 = dma.hbm_to_vmem [thread:$0]  %s2, 64, %s45, [#allocation6]
    $region13: #{tpu_custom_call.1} parent=1 // pred_fallthru
      _
    // Predicated region
    $region14: #{tpu_custom_call.1} parent=1 // pred_check
      _
    $region15: #{tpu_custom_call.1} parent=1 // pred_check_branch
      %49 = sbr.rel (0) target = $region17
    $region16: #{tpu_custom_call.1} parent=1 // pred_region
      %s51 = ssub.s32 3072, 3072
      %52 = vsyncadd [#allocation9], %s51
      %s53 = sshll.u32 [#allocation8], 4
      %s54 = int_to_ptr.vmem [resolvable:$true] %s53
      %59 = dma.hbm_to_vmem [thread:$0]  %s3, 3072, %s54, [#allocation9], 768, 768, 48
    $region17: #{tpu_custom_call.1} parent=1 // pred_fallthru
      _
    // Predicated region
    $region18: #{tpu_custom_call.1} parent=1 // pred_check
      _
    $region19: #{tpu_custom_call.1} parent=1 // pred_check_branch
      %61 = sbr.rel (0) target = $region21
    $region20: #{tpu_custom_call.1} parent=1 // pred_region
      _
    $region21: #{tpu_custom_call.1} parent=1 // pred_fallthru
      _
    // Predicated region
    $region22: #{tpu_custom_call.1} parent=1 // pred_check
      _
    $region23: #{tpu_custom_call.1} parent=1 // pred_check_branch
      %63 = sbr.rel (0) target = $region25
    $region24: #{tpu_custom_call.1} parent=1 // pred_region
      %64 = dma.done [#allocation3], 256
    $region25: #{tpu_custom_call.1} parent=1 // pred_fallthru
      _
    // Predicated region
    $region26: #{tpu_custom_call.1} parent=1 // pred_check
      _
    $region27: #{tpu_custom_call.1} parent=1 // pred_check_branch
      %66 = sbr.rel (0) target = $region29
    $region28: #{tpu_custom_call.1} parent=1 // pred_region
      %67 = dma.done [#allocation6], 512
    $region29: #{tpu_custom_call.1} parent=1 // pred_fallthru
      _
    // Predicated region
    $region30: #{tpu_custom_call.1} parent=1 // pred_check
      _
    $region31: #{tpu_custom_call.1} parent=1 // pred_check_branch
      %69 = sbr.rel (0) target = $region33
    $region32: #{tpu_custom_call.1} parent=1 // pred_region
      %70 = dma.done [#allocation6], 64
    $region33: #{tpu_custom_call.1} parent=1 // pred_fallthru
      _
    // Predicated region
    $region34: #{tpu_custom_call.1} parent=1 // pred_check
      _
    $region35: #{tpu_custom_call.1} parent=1 // pred_check_branch
      %72 = sbr.rel (0) target = $region37
    $region36: #{tpu_custom_call.1} parent=1 // pred_region
      %73 = dma.done [#allocation9], 3072
    $region37: #{tpu_custom_call.1} parent=1 // pred_fallthru
      _
    %v74 = vld [vmem:[#allocation7] sm:$0x7]
    %v75 = vld [vmem:[#allocation2] sm:$0xff]
    %v76 = vld [vmem:[#allocation2 + $0x8] sm:$0xff]
    %v77 = vld [vmem:[#allocation5] sm:$0xff]
    %v78 = vld [vmem:[#allocation5 + $0x8] sm:$0xff]
    %v79 = vld [vmem:[#allocation5 + $0x10] sm:$0xff]
    %v80 = vld [vmem:[#allocation5 + $0x18] sm:$0xff]
    %v81 = vlaneseq
    %v82 = vshrl.u32 %v81, 7
    %v83 = vsub.s32 0, %v82
    %v84 = vrot.slane %v74, %v83
    %vm85 = vcmask 261120
    %v87 = vsel %vm85, %v75, 0
    %v90 = vsel %vm85, %v76, 0
    %92 = vmatprep.subr.mxu0 0.0
    %93 = vmatpush1.msra.mxu0 0.0
    %94 = vmatprep.subr.mxu0 0.0
    %95 = vmatpush1.msra.mxu0 0.0
    %96 = vmatprep.subr.mxu0 0.0
    %97 = vmatpush1.msra.mxu0 0.0
    %98 = vmatprep.subr.mxu0 0.0
    %99 = vmatpush1.msra.mxu0 0.0
    %100 = vmatprep.subr.mxu0 0.0
    %101 = vmatpush1.msra.mxu0 0.0
    %102 = vmatprep.subr.mxu0 0.0
    %103 = vmatpush1.msra.mxu0 0.0
    %104 = vmatprep.subr.mxu0 0.0
    %105 = vmatpush1.msra.mxu0 0.0
    %106 = vmatprep.subr.mxu0 0.0
    %107 = vmatpush1.msra.mxu0 0.0
    %108 = vmatprep.subr.mxu0 0.0
    %109 = vmatpush1.msra.mxu0 0.0
    %110 = vmatprep.subr.mxu0 0.0
    %111 = vmatpush1.msra.mxu0 0.0
    %112 = vmatprep.subr.mxu0 0.0
    %113 = vmatpush1.msra.mxu0 0.0
    %114 = vmatprep.subr.mxu0 0.0
    %115 = vmatpush1.msra.mxu0 0.0
    %116 = vmatprep.subr.mxu0 0.0
    %117 = vmatpush1.msra.mxu0 %v80
    %118 = vmatprep.subr.mxu0 0.0
    %119 = vmatpush1.msra.mxu0 %v79
    %120 = vmatprep.subr.mxu0 0.0
    %121 = vmatpush1.msra.mxu0 %v78
    %122 = vmatprep.subr.mxu0 0.0
    %123 = vmatpush1.msra.mxu0 %v77
    %124 = vmatprep.subr.mxu0 0.0
    %125 = vmatpush2.msra.mxu0 0.0
    %126 = vmatprep.subr.mxu0 0.0
    %127 = vmatpush2.msra.mxu0 0.0
    %128 = vmatprep.subr.mxu0 0.0
    %129 = vmatpush2.msra.mxu0 0.0
    %130 = vmatprep.subr.mxu0 0.0
    %131 = vmatpush2.msra.mxu0 0.0
    %132 = vmatprep.subr.mxu0 0.0
    %133 = vmatpush2.msra.mxu0 0.0
    %134 = vmatprep.subr.mxu0 0.0
    %135 = vmatpush2.msra.mxu0 0.0
    %136 = vmatprep.subr.mxu0 0.0
    %137 = vmatpush2.msra.mxu0 0.0
    %138 = vmatprep.subr.mxu0 0.0
    %139 = vmatpush2.msra.mxu0 0.0
    %140 = vmatprep.subr.mxu0 0.0
    %141 = vmatpush2.msra.mxu0 0.0
    %142 = vmatprep.subr.mxu0 0.0
    %143 = vmatpush2.msra.mxu0 0.0
    %144 = vmatprep.subr.mxu0 0.0
    %145 = vmatpush2.msra.mxu0 0.0
    %146 = vmatprep.subr.mxu0 0.0
    %147 = vmatpush2.msra.mxu0 0.0
    %148 = vmatprep.subr.mxu0 0.0
    %149 = vmatpush2.msra.mxu0 0.0
    %150 = vmatprep.subr.mxu0 0.0
    %151 = vmatpush2.msra.mxu0 0.0
    %152 = vmatprep.subr.mxu0 0.0
    %153 = vmatpush2.msra.mxu0 0.0
    %154 = vmatprep.subr.mxu0 0.0
    %155 = vmatpush2.msra.mxu0 0.0
    %156 = vmatprep.mubr.f32.mxu0 0.0
    %157 = vmatmul.mubr.f32.gmra.mxu0 %v87
    %v158 = vpop.f32.mrf.mxu0
    %v159 = vadd.f32 %v84, %v158
    %v160 = vpop.f32.mrf.mxu0
    %161 = vmatprep.mubr.f32.mxu0 0.0
    %162 = vmatmul.mubr.f32.gmra.mxu0 %v90
    %v163 = vpop.f32.mrf.mxu0
    %v164 = vadd.f32 %v84, %v163
    %v165 = vpop.f32.mrf.mxu0
    %166 = vdwg.mxu0
    %v167 = vmul.f32 %v159, 0.5
    %v168 = vmul.f32 %v164, 0.5
    %v169 = vmul.f32 %v159, 0.70710677
    %v170 = vmul.f32 %v164, 0.70710677
    %v171 = verf.f32.pop %v169
    %v172 = verf.f32.pop %v170
    %v173 = vadd.f32 %v171, 1.0
    %v174 = vadd.f32 %v172, 1.0
    %v175 = vmul.f32 %v167, %v173
    %v176 = vmul.f32 %v168, %v174
    %v177 = vsel %vm85, %v175, 0.0
    %178 = vadd.xlane.f32.xlu0 %v177
    %v179 = vpop.xlane.xlu0 %178
    %v180 = vsel %vm85, %v176, 0.0
    %181 = vadd.xlane.f32.xlu0 %v180
    %v182 = vpop.xlane.xlu0 %181
    %v183 = vrcp.pop 32.0
    %v184 = vmul.f32 %v179, %v183
    %v185 = vmul.f32 %v182, %v183
    %v186 = vmul.f32 %v175, %v175
    %v187 = vmul.f32 %v176, %v176
    %v188 = vsel %vm85, %v186, 0.0
    %189 = vadd.xlane.f32.xlu0 %v188
    %v190 = vpop.xlane.xlu0 %189
    %v191 = vsel %vm85, %v187, 0.0
    %192 = vadd.xlane.f32.xlu0 %v191
    %v193 = vpop.xlane.xlu0 %192
    %v194 = vmul.f32 %v190, %v183
    %v195 = vmul.f32 %v193, %v183
    %v196 = vmul.f32 %v184, %v184
    %v197 = vmul.f32 %v185, %v185
    %v198 = vsub.f32 %v194, %v196
    %v199 = vsub.f32 %v195, %v197
    %v200 = vsub.f32 %v175, %v184
    %v201 = vsub.f32 %v176, %v185
    %v202 = vadd.f32 %v198, 1e-12
    %v203 = vadd.f32 %v199, 1e-12
    %v204 = vrsqrt.pop %v202
    %v205 = vrsqrt.pop %v203
    %v206 = vmul.f32 %v200, %v204
    %v207 = vmul.f32 %v201, %v205
    %v208 = vlaneseq
    %v209 = vshrl.u32 %v208, 7
    %v210 = vsub.s32 1, %v209
    %v211 = vrot.slane %v74, %v210
    %v212 = vmul.f32 %v206, %v211
    %v213 = vmul.f32 %v207, %v211
    %v214 = vlaneseq
    %v215 = vshrl.u32 %v214, 7
    %v216 = vsub.s32 2, %v215
    %v217 = vrot.slane %v74, %v216
    %v218 = vadd.f32 %v212, %v217
    %v219 = vadd.f32 %v213, %v217
    %v220 = vld [vmem:[#allocation8] sm:$0xff]
    %v221 = vld [vmem:[#allocation8 + $0x8] sm:$0xff]
    %v222 = vld [vmem:[#allocation8 + $0x10] sm:$0xff]
    %v223 = vld [vmem:[#allocation8 + $0x18] sm:$0xff]
    %v224 = vld [vmem:[#allocation8 + $0x20] sm:$0xff]
    %v225 = vld [vmem:[#allocation8 + $0x28] sm:$0xff]
    %v226 = vld [vmem:[#allocation8 + $0x30] sm:$0xff]
    %v227 = vld [vmem:[#allocation8 + $0x38] sm:$0xff]
    %v228 = vld [vmem:[#allocation8 + $0x40] sm:$0xff]
    %v229 = vld [vmem:[#allocation8 + $0x48] sm:$0xff]
    %v230 = vld [vmem:[#allocation8 + $0x50] sm:$0xff]
    %v231 = vld [vmem:[#allocation8 + $0x58] sm:$0xff]
    %v232 = vld [vmem:[#allocation8 + $0x60] sm:$0xff]
    %v233 = vld [vmem:[#allocation8 + $0x68] sm:$0xff]
    %v234 = vld [vmem:[#allocation8 + $0x70] sm:$0xff]
    %v235 = vld [vmem:[#allocation8 + $0x78] sm:$0xff]
    %v236 = vld [vmem:[#allocation8 + $0x80] sm:$0xff]
    %v237 = vld [vmem:[#allocation8 + $0x88] sm:$0xff]
    %v238 = vld [vmem:[#allocation8 + $0x90] sm:$0xff]
    %v239 = vld [vmem:[#allocation8 + $0x98] sm:$0xff]
    %v240 = vld [vmem:[#allocation8 + $0xa0] sm:$0xff]
    %v241 = vld [vmem:[#allocation8 + $0xa8] sm:$0xff]
    %v242 = vld [vmem:[#allocation8 + $0xb0] sm:$0xff]
    %v243 = vld [vmem:[#allocation8 + $0xb8] sm:$0xff]
    %v244 = vld [vmem:[%s4] sm:$0x3f]
    %v246 = vlaneseq
    %v247 = vshrl.u32 %v246, 7
    %v248 = vsub.s32 0, %v247
    %v249 = vrot.slane %v244, %v248
    %v250 = vlaneseq
    %v251 = vshrl.u32 %v250, 7
    %v252 = vsub.s32 1, %v251
    %v253 = vrot.slane %v244, %v252
    %v254 = vlaneseq
    %v255 = vshrl.u32 %v254, 7
    %v256 = vsub.s32 2, %v255
    %v257 = vrot.slane %v244, %v256
    %v258 = vlaneseq
    %v259 = vshrl.u32 %v258, 7
    %v260 = vsub.s32 3, %v259
    %v261 = vrot.slane %v244, %v260
    %v262 = vlaneseq
    %v263 = vshrl.u32 %v262, 7
    %v264 = vsub.s32 4, %v263
    %v265 = vrot.slane %v244, %v264
    %v266 = vlaneseq
    %v267 = vshrl.u32 %v266, 7
    %v268 = vsub.s32 5, %v267
    %v269 = vrot.slane %v244, %v268
    %v277 = vsel %vm85, %v218, 0
    %v280 = vsel %vm85, %v219, 0
    %282 = vmatprep.subr.mxu0 0.0
    %283 = vmatpush1.msra.mxu0 0.0
    %284 = vmatprep.subr.mxu0 0.0
    %285 = vmatpush1.msra.mxu0 0.0
    %286 = vmatprep.subr.mxu0 0.0
    %287 = vmatpush1.msra.mxu0 0.0
    %288 = vmatprep.subr.mxu0 0.0
    %289 = vmatpush1.msra.mxu0 0.0
    %290 = vmatprep.subr.mxu0 0.0
    %291 = vmatpush1.msra.mxu0 0.0
    %292 = vmatprep.subr.mxu0 0.0
    %293 = vmatpush1.msra.mxu0 0.0
    %294 = vmatprep.subr.mxu0 0.0
    %295 = vmatpush1.msra.mxu0 0.0
    %296 = vmatprep.subr.mxu0 0.0
    %297 = vmatpush1.msra.mxu0 0.0
    %298 = vmatprep.subr.mxu0 0.0
    %299 = vmatpush1.msra.mxu0 0.0
    %300 = vmatprep.subr.mxu0 0.0
    %301 = vmatpush1.msra.mxu0 0.0
    %302 = vmatprep.subr.mxu0 0.0
    %303 = vmatpush1.msra.mxu0 0.0
    %304 = vmatprep.subr.mxu0 0.0
    %305 = vmatpush1.msra.mxu0 0.0
    %306 = vmatprep.subr.mxu0 %v239
    %307 = vmatpush1.msra.mxu0 %v238
    %308 = vmatprep.subr.mxu0 %v233
    %309 = vmatpush1.msra.mxu0 %v232
    %310 = vmatprep.subr.mxu0 %v227
    %311 = vmatpush1.msra.mxu0 %v226
    %312 = vmatprep.subr.mxu0 %v221
    %313 = vmatpush1.msra.mxu0 %v220
    %314 = vmatprep.subr.mxu0 0.0
    %315 = vmatpush2.msra.mxu0 0.0
    %316 = vmatprep.subr.mxu0 0.0
    %317 = vmatpush2.msra.mxu0 0.0
    %318 = vmatprep.subr.mxu0 0.0
    %319 = vmatpush2.msra.mxu0 0.0
    %320 = vmatprep.subr.mxu0 0.0
    %321 = vmatpush2.msra.mxu0 0.0
    %322 = vmatprep.subr.mxu0 0.0
    %323 = vmatpush2.msra.mxu0 0.0
    %324 = vmatprep.subr.mxu0 0.0
    %325 = vmatpush2.msra.mxu0 0.0
    %326 = vmatprep.subr.mxu0 0.0
    %327 = vmatpush2.msra.mxu0 0.0
    %328 = vmatprep.subr.mxu0 0.0
    %329 = vmatpush2.msra.mxu0 0.0
    %330 = vmatprep.subr.mxu0 0.0
    %331 = vmatpush2.msra.mxu0 0.0
    %332 = vmatprep.subr.mxu0 0.0
    %333 = vmatpush2.msra.mxu0 0.0
    %334 = vmatprep.subr.mxu0 0.0
    %335 = vmatpush2.msra.mxu0 0.0
    %336 = vmatprep.subr.mxu0 0.0
    %337 = vmatpush2.msra.mxu0 0.0
    %338 = vmatprep.subr.mxu0 0.0
    %339 = vmatpush2.msra.mxu0 0.0
    %340 = vmatprep.subr.mxu0 0.0
    %341 = vmatpush2.msra.mxu0 0.0
    %342 = vmatprep.subr.mxu0 0.0
    %343 = vmatpush2.msra.mxu0 0.0
    %344 = vmatprep.subr.mxu0 0.0
    %345 = vmatpush2.msra.mxu0 0.0
    %346 = vmatprep.mubr.f32.mxu0 0.0
    %347 = vmatmul.mubr.f32.gmra.mxu0 %v277
    %v348 = vpop.f32.mrf.mxu0
    %v349 = vadd.f32 %v249, %v348
    %v350 = vpop.f32.mrf.mxu0
    %v351 = vadd.f32 %v253, %v350
    %352 = vmatprep.mubr.f32.mxu0 0.0
    %353 = vmatmul.mubr.f32.gmra.mxu0 %v280
    %v354 = vpop.f32.mrf.mxu0
    %v355 = vadd.f32 %v249, %v354
    %v356 = vpop.f32.mrf.mxu0
    %v357 = vadd.f32 %v253, %v356
    %358 = vdwg.mxu0
    %359 = vmatprep.subr.mxu0 0.0
    %360 = vmatpush1.msra.mxu0 0.0
    %361 = vmatprep.subr.mxu0 0.0
    %362 = vmatpush1.msra.mxu0 0.0
    %363 = vmatprep.subr.mxu0 0.0
    %364 = vmatpush1.msra.mxu0 0.0
    %365 = vmatprep.subr.mxu0 0.0
    %366 = vmatpush1.msra.mxu0 0.0
    %367 = vmatprep.subr.mxu0 0.0
    %368 = vmatpush1.msra.mxu0 0.0
    %369 = vmatprep.subr.mxu0 0.0
    %370 = vmatpush1.msra.mxu0 0.0
    %371 = vmatprep.subr.mxu0 0.0
    %372 = vmatpush1.msra.mxu0 0.0
    %373 = vmatprep.subr.mxu0 0.0
    %374 = vmatpush1.msra.mxu0 0.0
    %375 = vmatprep.subr.mxu0 0.0
    %376 = vmatpush1.msra.mxu0 0.0
    %377 = vmatprep.subr.mxu0 0.0
    %378 = vmatpush1.msra.mxu0 0.0
    %379 = vmatprep.subr.mxu0 0.0
    %380 = vmatpush1.msra.mxu0 0.0
    %381 = vmatprep.subr.mxu0 0.0
    %382 = vmatpush1.msra.mxu0 0.0
    %383 = vmatprep.subr.mxu0 %v241
    %384 = vmatpush1.msra.mxu0 %v240
    %385 = vmatprep.subr.mxu0 %v235
    %386 = vmatpush1.msra.mxu0 %v234
    %387 = vmatprep.subr.mxu0 %v229
    %388 = vmatpush1.msra.mxu0 %v228
    %389 = vmatprep.subr.mxu0 %v223
    %390 = vmatpush1.msra.mxu0 %v222
    %391 = vmatprep.subr.mxu0 0.0
    %392 = vmatpush2.msra.mxu0 0.0
    %393 = vmatprep.subr.mxu0 0.0
    %394 = vmatpush2.msra.mxu0 0.0
    %395 = vmatprep.subr.mxu0 0.0
    %396 = vmatpush2.msra.mxu0 0.0
    %397 = vmatprep.subr.mxu0 0.0
    %398 = vmatpush2.msra.mxu0 0.0
    %399 = vmatprep.subr.mxu0 0.0
    %400 = vmatpush2.msra.mxu0 0.0
    %401 = vmatprep.subr.mxu0 0.0
    %402 = vmatpush2.msra.mxu0 0.0
    %403 = vmatprep.subr.mxu0 0.0
    %404 = vmatpush2.msra.mxu0 0.0
    %405 = vmatprep.subr.mxu0 0.0
    %406 = vmatpush2.msra.mxu0 0.0
    %407 = vmatprep.subr.mxu0 0.0
    %408 = vmatpush2.msra.mxu0 0.0
    %409 = vmatprep.subr.mxu0 0.0
    %410 = vmatpush2.msra.mxu0 0.0
    %411 = vmatprep.subr.mxu0 0.0
    %412 = vmatpush2.msra.mxu0 0.0
    %413 = vmatprep.subr.mxu0 0.0
    %414 = vmatpush2.msra.mxu0 0.0
    %415 = vmatprep.subr.mxu0 0.0
    %416 = vmatpush2.msra.mxu0 0.0
    %417 = vmatprep.subr.mxu0 0.0
    %418 = vmatpush2.msra.mxu0 0.0
    %419 = vmatprep.subr.mxu0 0.0
    %420 = vmatpush2.msra.mxu0 0.0
    %421 = vmatprep.subr.mxu0 0.0
    %422 = vmatpush2.msra.mxu0 0.0
    %423 = vmatprep.mubr.f32.mxu0 0.0
    %424 = vmatmul.mubr.f32.gmra.mxu0 %v277
    %v425 = vpop.f32.mrf.mxu0
    %v426 = vadd.f32 %v257, %v425
    %v427 = vpop.f32.mrf.mxu0
    %v428 = vadd.f32 %v261, %v427
    %429 = vmatprep.mubr.f32.mxu0 0.0
    %430 = vmatmul.mubr.f32.gmra.mxu0 %v280
    %v431 = vpop.f32.mrf.mxu0
    %v432 = vadd.f32 %v257, %v431
    %v433 = vpop.f32.mrf.mxu0
    %v434 = vadd.f32 %v261, %v433
    %435 = vdwg.mxu0
    %436 = vmatprep.subr.mxu0 0.0
    %437 = vmatpush1.msra.mxu0 0.0
    %438 = vmatprep.subr.mxu0 0.0
    %439 = vmatpush1.msra.mxu0 0.0
    %440 = vmatprep.subr.mxu0 0.0
    %441 = vmatpush1.msra.mxu0 0.0
    %442 = vmatprep.subr.mxu0 0.0
    %443 = vmatpush1.msra.mxu0 0.0
    %444 = vmatprep.subr.mxu0 0.0
    %445 = vmatpush1.msra.mxu0 0.0
    %446 = vmatprep.subr.mxu0 0.0
    %447 = vmatpush1.msra.mxu0 0.0
    %448 = vmatprep.subr.mxu0 0.0
    %449 = vmatpush1.msra.mxu0 0.0
    %450 = vmatprep.subr.mxu0 0.0
    %451 = vmatpush1.msra.mxu0 0.0
    %452 = vmatprep.subr.mxu0 0.0
    %453 = vmatpush1.msra.mxu0 0.0
    %454 = vmatprep.subr.mxu0 0.0
    %455 = vmatpush1.msra.mxu0 0.0
    %456 = vmatprep.subr.mxu0 0.0
    %457 = vmatpush1.msra.mxu0 0.0
    %458 = vmatprep.subr.mxu0 0.0
    %459 = vmatpush1.msra.mxu0 0.0
    %460 = vmatprep.subr.mxu0 %v243
    %461 = vmatpush1.msra.mxu0 %v242
    %462 = vmatprep.subr.mxu0 %v237
    %463 = vmatpush1.msra.mxu0 %v236
    %464 = vmatprep.subr.mxu0 %v231
    %465 = vmatpush1.msra.mxu0 %v230
    %466 = vmatprep.subr.mxu0 %v225
    %467 = vmatpush1.msra.mxu0 %v224
    %468 = vmatprep.subr.mxu0 0.0
    %469 = vmatpush2.msra.mxu0 0.0
    %470 = vmatprep.subr.mxu0 0.0
    %471 = vmatpush2.msra.mxu0 0.0
    %472 = vmatprep.subr.mxu0 0.0
    %473 = vmatpush2.msra.mxu0 0.0
    %474 = vmatprep.subr.mxu0 0.0
    %475 = vmatpush2.msra.mxu0 0.0
    %476 = vmatprep.subr.mxu0 0.0
    %477 = vmatpush2.msra.mxu0 0.0
    %478 = vmatprep.subr.mxu0 0.0
    %479 = vmatpush2.msra.mxu0 0.0
    %480 = vmatprep.subr.mxu0 0.0
    %481 = vmatpush2.msra.mxu0 0.0
    %482 = vmatprep.subr.mxu0 0.0
    %483 = vmatpush2.msra.mxu0 0.0
    %484 = vmatprep.subr.mxu0 0.0
    %485 = vmatpush2.msra.mxu0 0.0
    %486 = vmatprep.subr.mxu0 0.0
    %487 = vmatpush2.msra.mxu0 0.0
    %488 = vmatprep.subr.mxu0 0.0
    %489 = vmatpush2.msra.mxu0 0.0
    %490 = vmatprep.subr.mxu0 0.0
    %491 = vmatpush2.msra.mxu0 0.0
    %492 = vmatprep.subr.mxu0 0.0
    %493 = vmatpush2.msra.mxu0 0.0
    %494 = vmatprep.subr.mxu0 0.0
    %495 = vmatpush2.msra.mxu0 0.0
    %496 = vmatprep.subr.mxu0 0.0
    %497 = vmatpush2.msra.mxu0 0.0
    %498 = vmatprep.subr.mxu0 0.0
    %499 = vmatpush2.msra.mxu0 0.0
    %500 = vmatprep.mubr.f32.mxu0 0.0
    %501 = vmatmul.mubr.f32.gmra.mxu0 %v277
    %v502 = vpop.f32.mrf.mxu0
    %v503 = vadd.f32 %v265, %v502
    %v504 = vpop.f32.mrf.mxu0
    %v505 = vadd.f32 %v269, %v504
    %506 = vmatprep.mubr.f32.mxu0 0.0
    %507 = vmatmul.mubr.f32.gmra.mxu0 %v280
    %v508 = vpop.f32.mrf.mxu0
    %v509 = vadd.f32 %v265, %v508
    %v510 = vpop.f32.mrf.mxu0
    %v511 = vadd.f32 %v269, %v510
    %512 = vdwg.mxu0
    %513 = vst [vmem:[#allocation10] sm:$0xff] %v349
    %514 = vst [vmem:[#allocation10 + $0x8] sm:$0xff] %v351
    %515 = vst [vmem:[#allocation10 + $0x10] sm:$0xff] %v426
    %516 = vst [vmem:[#allocation10 + $0x18] sm:$0xff] %v428
    %517 = vst [vmem:[#allocation10 + $0x20] sm:$0xff] %v503
    %518 = vst [vmem:[#allocation10 + $0x28] sm:$0xff] %v505
    %519 = vst [vmem:[#allocation10 + $0x30] sm:$0xff] %v355
    %520 = vst [vmem:[#allocation10 + $0x38] sm:$0xff] %v357
    %521 = vst [vmem:[#allocation10 + $0x40] sm:$0xff] %v432
    %522 = vst [vmem:[#allocation10 + $0x48] sm:$0xff] %v434
    %523 = vst [vmem:[#allocation10 + $0x50] sm:$0xff] %v509
    %524 = vst [vmem:[#allocation10 + $0x58] sm:$0xff] %v511
    // Predicated region
    $region38: #{tpu_custom_call.1} parent=1 // pred_check
      _
    $region39: #{tpu_custom_call.1} parent=1 // pred_check_branch
      %526 = sbr.rel (0) target = $region41
    $region40: #{tpu_custom_call.1} parent=1 // pred_region
      %s528 = ssub.s32 1536, 1536
      %529 = vsyncadd [#allocation4], %s528
      %s530 = sshll.u32 [#allocation10], 4
      %s531 = int_to_ptr.vmem [resolvable:$true] %s530
      %536 = dma.vmem_to_hbm [thread:$0]  %s531, 1536, %s5, [#allocation4], 768, 768, 48
    $region41: #{tpu_custom_call.1} parent=1 // pred_fallthru
      _
    // Predicated region
    $region42: #{tpu_custom_call.1} parent=1 // pred_check
      _
    $region43: #{tpu_custom_call.1} parent=1 // pred_check_branch
      %538 = sbr.rel (0) target = $region45
    $region44: #{tpu_custom_call.1} parent=1 // pred_region
      %539 = dma.done [#allocation4], 1536
    $region45: #{tpu_custom_call.1} parent=1 // pred_fallthru
      _
    %540 = vsyncpa [#allocation3], 1
    %541 = vsyncpa [#allocation6], 1
    %542 = vsyncpa [#allocation9], 1
    %543 = vsyncpa [#allocation4], 1

// kernel: tpu_custom_call.1
$region0: #{tpu_custom_call.1}
  #allocation0 [shape = 'u32[]', space=smem, size = 0x4, offset = 0x4, fixed_abs, tag = 'smem constant byte address 0x4 - core index']
  #allocation1 [shape = 'u32[144,128]{1,0:T(1,128)}', space=vmem, size = 0x12000, scoped, tag = 'internal scratch']
  %s0 = inlined_call_operand.hbm [shape: f32[16,32], index: 0, kind: input, shape index: {}]
  %s1 = inlined_call_operand.hbm [shape: f32[32,32], index: 1, kind: input, shape index: {}]
  %s2 = inlined_call_operand.hbm [shape: f32[3,32], index: 2, kind: input, shape index: {}]
  %s3 = inlined_call_operand.hbm [shape: f32[32,768], index: 3, kind: input, shape index: {}]
  %s4 = inlined_call_operand.vmem [shape: f32[1,768], index: 4, kind: input, shape index: {}]
  %s5 = inlined_call_operand.hbm [shape: f32[16,768], index: 5, kind: output, shape index: {}]
  %s6 = sld [smem:[#allocation0]]
  $region46: #{tpu_custom_call.1} parent=0
    _
  %s8 = ssub.s32 1, %s6
  %s9 = scalar_select 0, %s8, %s6
  $region1: #{tpu_custom_call.1} parent=0
    #allocation2 [shape = 'u8[8192]{0}', space=vmem, size = 0x2000, scoped, tag = 'input window, operand 0, single buffered']
    #allocation3 [shape = 's32[1]{0}', space=sflag, size = 0x4, scoped, tag = 'scoped memory for tpu_custom_call.1']
    #allocation4 [shape = 's32[1]{0}', space=sflag, size = 0x4, scoped, tag = 'scoped memory for tpu_custom_call.1']
    #allocation5 [shape = 'u8[16384]{0}', space=vmem, size = 0x4000, scoped, tag = 'input window, operand 1, single buffered']
    #allocation6 [shape = 's32[1]{0}', space=sflag, size = 0x4, scoped, tag = 'scoped memory for tpu_custom_call.1']
    #allocation7 [shape = 'u8[2048]{0}', space=vmem, size = 0x800, scoped, tag = 'input window, operand 2, single buffered']
    #allocation8 [shape = 'u8[98304]{0}', space=vmem, size = 0x18000, scoped, tag = 'input window, operand 3, single buffered']
    #allocation9 [shape = 's32[1]{0}', space=sflag, size = 0x4, scoped, tag = 'scoped memory for tpu_custom_call.1']
    #allocation10 [shape = 'u8[49152]{0}', space=vmem, size = 0xc000, scoped, tag = 'output window, operand 0, single buffered']
    %10 = vsyncpa [#allocation3], 0
    %11 = vsyncpa [#allocation6], 0
    %12 = vsyncpa [#allocation9], 0
    %13 = vsyncpa [#allocation4], 0
    // Predicated region
    $region2: #{tpu_custom_call.1} parent=1 // pred_check
      _
    $region3: #{tpu_custom_call.1} parent=1 // pred_check_branch
      %15 = sbr.rel (0) target = $region5
    $region4: #{tpu_custom_call.1} parent=1 // pred_region
      %s17 = ssub.s32 256, 256
      %18 = vsyncadd [#allocation3], %s17
      %s19 = sshll.u32 [#allocation2], 4
      %s20 = int_to_ptr.vmem [resolvable:$true] %s19
      %25 = dma.hbm_to_vmem [thread:$0]  %s0, 256, %s20, [#allocation3], 128, 128, 8
    $region5: #{tpu_custom_call.1} parent=1 // pred_fallthru
      _
    // Predicated region
    $region6: #{tpu_custom_call.1} parent=1 // pred_check
      _
    $region7: #{tpu_custom_call.1} parent=1 // pred_check_branch
      %27 = sbr.rel (0) target = $region9
    $region8: #{tpu_custom_call.1} parent=1 // pred_region
      %s29 = ssub.s32 512, 512
      %30 = vsyncadd [#allocation6], %s29
      %s31 = sshll.u32 [#allocation5], 4
      %s32 = int_to_ptr.vmem [resolvable:$true] %s31
      %37 = dma.hbm_to_vmem [thread:$0]  %s1, 512, %s32, [#allocation6], 128, 128, 8
    $region9: #{tpu_custom_call.1} parent=1 // pred_fallthru
      _
    // Predicated region
    $region10: #{tpu_custom_call.1} parent=1 // pred_check
      _
    $region11: #{tpu_custom_call.1} parent=1 // pred_check_branch
      %39 = sbr.rel (0) target = $region13
    $region12: #{tpu_custom_call.1} parent=1 // pred_region
      %s41 = ssub.s32 64, 64
      %42 = vsyncadd [#allocation6], %s41
      %s44 = sshll.u32 [#allocation7], 4
      %s45 = int_to_ptr.vmem [resolvable:$true] %s44
      %47 = dma.hbm_to_vmem [thread:$0]  %s2, 64, %s45, [#allocation6]
    $region13: #{tpu_custom_call.1} parent=1 // pred_fallthru
      _
    // Predicated region
    $region14: #{tpu_custom_call.1} parent=1 // pred_check
      _
    $region15: #{tpu_custom_call.1} parent=1 // pred_check_branch
      %49 = sbr.rel (0) target = $region17
    $region16: #{tpu_custom_call.1} parent=1 // pred_region
      %s51 = ssub.s32 3072, 3072
      %52 = vsyncadd [#allocation9], %s51
      %s53 = sshll.u32 [#allocation8], 4
      %s54 = int_to_ptr.vmem [resolvable:$true] %s53
      %59 = dma.hbm_to_vmem [thread:$0]  %s3, 3072, %s54, [#allocation9], 768, 768, 48
    $region17: #{tpu_custom_call.1} parent=1 // pred_fallthru
      _
    // Predicated region
    $region18: #{tpu_custom_call.1} parent=1 // pred_check
      _
    $region19: #{tpu_custom_call.1} parent=1 // pred_check_branch
      %61 = sbr.rel (0) target = $region21
    $region20: #{tpu_custom_call.1} parent=1 // pred_region
      _
    $region21: #{tpu_custom_call.1} parent=1 // pred_fallthru
      _
    // Predicated region
    $region22: #{tpu_custom_call.1} parent=1 // pred_check
      _
    $region23: #{tpu_custom_call.1} parent=1 // pred_check_branch
      %63 = sbr.rel (0) target = $region25
    $region24: #{tpu_custom_call.1} parent=1 // pred_region
      %64 = dma.done [#allocation3], 256
    $region25: #{tpu_custom_call.1} parent=1 // pred_fallthru
      _
    // Predicated region
    $region26: #{tpu_custom_call.1} parent=1 // pred_check
      _
    $region27: #{tpu_custom_call.1} parent=1 // pred_check_branch
      %66 = sbr.rel (0) target = $region29
    $region28: #{tpu_custom_call.1} parent=1 // pred_region
      %67 = dma.done [#allocation6], 512
    $region29: #{tpu_custom_call.1} parent=1 // pred_fallthru
      _
    // Predicated region
    $region30: #{tpu_custom_call.1} parent=1 // pred_check
      _
    $region31: #{tpu_custom_call.1} parent=1 // pred_check_branch
      %69 = sbr.rel (0) target = $region33
    $region32: #{tpu_custom_call.1} parent=1 // pred_region
      %70 = dma.done [#allocation6], 64
    $region33: #{tpu_custom_call.1} parent=1 // pred_fallthru
      _
    // Predicated region
    $region34: #{tpu_custom_call.1} parent=1 // pred_check
      _
    $region35: #{tpu_custom_call.1} parent=1 // pred_check_branch
      %72 = sbr.rel (0) target = $region37
    $region36: #{tpu_custom_call.1} parent=1 // pred_region
      %73 = dma.done [#allocation9], 3072
    $region37: #{tpu_custom_call.1} parent=1 // pred_fallthru
      _
    %v74 = vld [vmem:[#allocation7] sm:$0x7]
    %v75 = vld [vmem:[#allocation2] sm:$0xff]
    %v76 = vld [vmem:[#allocation2 + $0x8] sm:$0xff]
    %v77 = vld [vmem:[#allocation5] sm:$0xff]
    %v78 = vld [vmem:[#allocation5 + $0x8] sm:$0xff]
    %v79 = vld [vmem:[#allocation5 + $0x10] sm:$0xff]
    %v80 = vld [vmem:[#allocation5 + $0x18] sm:$0xff]
    %v81 = vlaneseq
    %v82 = vshrl.u32 %v81, 7
    %v83 = vsub.s32 0, %v82
    %v84 = vrot.slane %v74, %v83
    %vm85 = vcmask 261120
    %v87 = vsel %vm85, %v75, 0
    %v90 = vsel %vm85, %v76, 0
    %92 = vmatprep.subr.mxu0 0.0
    %93 = vmatpush1.msra.mxu0 0.0
    %94 = vmatprep.subr.mxu0 0.0
    %95 = vmatpush1.msra.mxu0 0.0
    %96 = vmatprep.subr.mxu0 0.0
    %97 = vmatpush1.msra.mxu0 0.0
    %98 = vmatprep.subr.mxu0 0.0
    %99 = vmatpush1.msra.mxu0 0.0
    %100 = vmatprep.subr.mxu0 0.0
    %101 = vmatpush1.msra.mxu0 0.0
    %102 = vmatprep.subr.mxu0 0.0
    %103 = vmatpush1.msra.mxu0 0.0
    %104 = vmatprep.subr.mxu0 0.0
    %105 = vmatpush1.msra.mxu0 0.0
    %106 = vmatprep.subr.mxu0 0.0
    %107 = vmatpush1.msra.mxu0 0.0
    %108 = vmatprep.subr.mxu0 0.0
    %109 = vmatpush1.msra.mxu0 0.0
    %110 = vmatprep.subr.mxu0 0.0
    %111 = vmatpush1.msra.mxu0 0.0
    %112 = vmatprep.subr.mxu0 0.0
    %113 = vmatpush1.msra.mxu0 0.0
    %114 = vmatprep.subr.mxu0 0.0
    %115 = vmatpush1.msra.mxu0 0.0
    %116 = vmatprep.subr.mxu0 0.0
    %117 = vmatpush1.msra.mxu0 %v80
    %118 = vmatprep.subr.mxu0 0.0
    %119 = vmatpush1.msra.mxu0 %v79
    %120 = vmatprep.subr.mxu0 0.0
    %121 = vmatpush1.msra.mxu0 %v78
    %122 = vmatprep.subr.mxu0 0.0
    %123 = vmatpush1.msra.mxu0 %v77
    %124 = vmatprep.subr.mxu0 0.0
    %125 = vmatpush2.msra.mxu0 0.0
    %126 = vmatprep.subr.mxu0 0.0
    %127 = vmatpush2.msra.mxu0 0.0
    %128 = vmatprep.subr.mxu0 0.0
    %129 = vmatpush2.msra.mxu0 0.0
    %130 = vmatprep.subr.mxu0 0.0
    %131 = vmatpush2.msra.mxu0 0.0
    %132 = vmatprep.subr.mxu0 0.0
    %133 = vmatpush2.msra.mxu0 0.0
    %134 = vmatprep.subr.mxu0 0.0
    %135 = vmatpush2.msra.mxu0 0.0
    %136 = vmatprep.subr.mxu0 0.0
    %137 = vmatpush2.msra.mxu0 0.0
    %138 = vmatprep.subr.mxu0 0.0
    %139 = vmatpush2.msra.mxu0 0.0
    %140 = vmatprep.subr.mxu0 0.0
    %141 = vmatpush2.msra.mxu0 0.0
    %142 = vmatprep.subr.mxu0 0.0
    %143 = vmatpush2.msra.mxu0 0.0
    %144 = vmatprep.subr.mxu0 0.0
    %145 = vmatpush2.msra.mxu0 0.0
    %146 = vmatprep.subr.mxu0 0.0
    %147 = vmatpush2.msra.mxu0 0.0
    %148 = vmatprep.subr.mxu0 0.0
    %149 = vmatpush2.msra.mxu0 0.0
    %150 = vmatprep.subr.mxu0 0.0
    %151 = vmatpush2.msra.mxu0 0.0
    %152 = vmatprep.subr.mxu0 0.0
    %153 = vmatpush2.msra.mxu0 0.0
    %154 = vmatprep.subr.mxu0 0.0
    %155 = vmatpush2.msra.mxu0 0.0
    %156 = vmatprep.mubr.f32.mxu0 0.0
    %157 = vmatmul.mubr.f32.gmra.mxu0 %v87
    %v158 = vpop.f32.mrf.mxu0
    %v159 = vadd.f32 %v84, %v158
    %v160 = vpop.f32.mrf.mxu0
    %161 = vmatprep.mubr.f32.mxu0 0.0
    %162 = vmatmul.mubr.f32.gmra.mxu0 %v90
    %v163 = vpop.f32.mrf.mxu0
    %v164 = vadd.f32 %v84, %v163
    %v165 = vpop.f32.mrf.mxu0
    %166 = vdwg.mxu0
    %v167 = vmul.f32 %v159, 0.5
    %v168 = vmul.f32 %v164, 0.5
    %v169 = vmul.f32 %v159, 0.70710677
    %v170 = vmul.f32 %v164, 0.70710677
    %v171 = verf.f32.pop %v169
    %v172 = verf.f32.pop %v170
    %v173 = vadd.f32 %v171, 1.0
    %v174 = vadd.f32 %v172, 1.0
    %v175 = vmul.f32 %v167, %v173
    %v176 = vmul.f32 %v168, %v174
    %v177 = vsel %vm85, %v175, 0.0
    %178 = vadd.xlane.f32.xlu0 %v177
    %v179 = vpop.xlane.xlu0 %178
    %v180 = vsel %vm85, %v176, 0.0
    %181 = vadd.xlane.f32.xlu0 %v180
    %v182 = vpop.xlane.xlu0 %181
    %v183 = vrcp.pop 32.0
    %v184 = vmul.f32 %v179, %v183
    %v185 = vmul.f32 %v182, %v183
    %v186 = vmul.f32 %v175, %v175
    %v187 = vmul.f32 %v176, %v176
    %v188 = vsel %vm85, %v186, 0.0
    %189 = vadd.xlane.f32.xlu0 %v188
    %v190 = vpop.xlane.xlu0 %189
    %v191 = vsel %vm85, %v187, 0.0
    %192 = vadd.xlane.f32.xlu0 %v191
    %v193 = vpop.xlane.xlu0 %192
    %v194 = vmul.f32 %v190, %v183
    %v195 = vmul.f32 %v193, %v183
    %v196 = vmul.f32 %v184, %v184
    %v197 = vmul.f32 %v185, %v185
    %v198 = vsub.f32 %v194, %v196
    %v199 = vsub.f32 %v195, %v197
    %v200 = vsub.f32 %v175, %v184
    %v201 = vsub.f32 %v176, %v185
    %v202 = vadd.f32 %v198, 1e-12
    %v203 = vadd.f32 %v199, 1e-12
    %v204 = vrsqrt.pop %v202
    %v205 = vrsqrt.pop %v203
    %v206 = vmul.f32 %v200, %v204
    %v207 = vmul.f32 %v201, %v205
    %v208 = vlaneseq
    %v209 = vshrl.u32 %v208, 7
    %v210 = vsub.s32 1, %v209
    %v211 = vrot.slane %v74, %v210
    %v212 = vmul.f32 %v206, %v211
    %v213 = vmul.f32 %v207, %v211
    %v214 = vlaneseq
    %v215 = vshrl.u32 %v214, 7
    %v216 = vsub.s32 2, %v215
    %v217 = vrot.slane %v74, %v216
    %v218 = vadd.f32 %v212, %v217
    %v219 = vadd.f32 %v213, %v217
    %v220 = vld [vmem:[#allocation8] sm:$0xff]
    %v221 = vld [vmem:[#allocation8 + $0x8] sm:$0xff]
    %v222 = vld [vmem:[#allocation8 + $0x10] sm:$0xff]
    %v223 = vld [vmem:[#allocation8 + $0x18] sm:$0xff]
    %v224 = vld [vmem:[#allocation8 + $0x20] sm:$0xff]
    %v225 = vld [vmem:[#allocation8 + $0x28] sm:$0xff]
    %v226 = vld [vmem:[#allocation8 + $0x30] sm:$0xff]
    %v227 = vld [vmem:[#allocation8 + $0x38] sm:$0xff]
    %v228 = vld [vmem:[#allocation8 + $0x40] sm:$0xff]
    %v229 = vld [vmem:[#allocation8 + $0x48] sm:$0xff]
    %v230 = vld [vmem:[#allocation8 + $0x50] sm:$0xff]
    %v231 = vld [vmem:[#allocation8 + $0x58] sm:$0xff]
    %v232 = vld [vmem:[#allocation8 + $0x60] sm:$0xff]
    %v233 = vld [vmem:[#allocation8 + $0x68] sm:$0xff]
    %v234 = vld [vmem:[#allocation8 + $0x70] sm:$0xff]
    %v235 = vld [vmem:[#allocation8 + $0x78] sm:$0xff]
    %v236 = vld [vmem:[#allocation8 + $0x80] sm:$0xff]
    %v237 = vld [vmem:[#allocation8 + $0x88] sm:$0xff]
    %v238 = vld [vmem:[#allocation8 + $0x90] sm:$0xff]
    %v239 = vld [vmem:[#allocation8 + $0x98] sm:$0xff]
    %v240 = vld [vmem:[#allocation8 + $0xa0] sm:$0xff]
    %v241 = vld [vmem:[#allocation8 + $0xa8] sm:$0xff]
    %v242 = vld [vmem:[#allocation8 + $0xb0] sm:$0xff]
    %v243 = vld [vmem:[#allocation8 + $0xb8] sm:$0xff]
    %v244 = vld [vmem:[%s4] sm:$0x3f]
    %v246 = vlaneseq
    %v247 = vshrl.u32 %v246, 7
    %v248 = vsub.s32 0, %v247
    %v249 = vrot.slane %v244, %v248
    %v250 = vlaneseq
    %v251 = vshrl.u32 %v250, 7
    %v252 = vsub.s32 1, %v251
    %v253 = vrot.slane %v244, %v252
    %v254 = vlaneseq
    %v255 = vshrl.u32 %v254, 7
    %v256 = vsub.s32 2, %v255
    %v257 = vrot.slane %v244, %v256
    %v258 = vlaneseq
    %v259 = vshrl.u32 %v258, 7
    %v260 = vsub.s32 3, %v259
    %v261 = vrot.slane %v244, %v260
    %v262 = vlaneseq
    %v263 = vshrl.u32 %v262, 7
    %v264 = vsub.s32 4, %v263
    %v265 = vrot.slane %v244, %v264
    %v266 = vlaneseq
    %v267 = vshrl.u32 %v266, 7
    %v268 = vsub.s32 5, %v267
    %v269 = vrot.slane %v244, %v268
    %v277 = vsel %vm85, %v218, 0
    %v280 = vsel %vm85, %v219, 0
    %282 = vmatprep.subr.mxu0 0.0
    %283 = vmatpush1.msra.mxu0 0.0
    %284 = vmatprep.subr.mxu0 0.0
    %285 = vmatpush1.msra.mxu0 0.0
    %286 = vmatprep.subr.mxu0 0.0
    %287 = vmatpush1.msra.mxu0 0.0
    %288 = vmatprep.subr.mxu0 0.0
    %289 = vmatpush1.msra.mxu0 0.0
    %290 = vmatprep.subr.mxu0 0.0
    %291 = vmatpush1.msra.mxu0 0.0
    %292 = vmatprep.subr.mxu0 0.0
    %293 = vmatpush1.msra.mxu0 0.0
    %294 = vmatprep.subr.mxu0 0.0
    %295 = vmatpush1.msra.mxu0 0.0
    %296 = vmatprep.subr.mxu0 0.0
    %297 = vmatpush1.msra.mxu0 0.0
    %298 = vmatprep.subr.mxu0 0.0
    %299 = vmatpush1.msra.mxu0 0.0
    %300 = vmatprep.subr.mxu0 0.0
    %301 = vmatpush1.msra.mxu0 0.0
    %302 = vmatprep.subr.mxu0 0.0
    %303 = vmatpush1.msra.mxu0 0.0
    %304 = vmatprep.subr.mxu0 0.0
    %305 = vmatpush1.msra.mxu0 0.0
    %306 = vmatprep.subr.mxu0 %v239
    %307 = vmatpush1.msra.mxu0 %v238
    %308 = vmatprep.subr.mxu0 %v233
    %309 = vmatpush1.msra.mxu0 %v232
    %310 = vmatprep.subr.mxu0 %v227
    %311 = vmatpush1.msra.mxu0 %v226
    %312 = vmatprep.subr.mxu0 %v221
    %313 = vmatpush1.msra.mxu0 %v220
    %314 = vmatprep.subr.mxu0 0.0
    %315 = vmatpush2.msra.mxu0 0.0
    %316 = vmatprep.subr.mxu0 0.0
    %317 = vmatpush2.msra.mxu0 0.0
    %318 = vmatprep.subr.mxu0 0.0
    %319 = vmatpush2.msra.mxu0 0.0
    %320 = vmatprep.subr.mxu0 0.0
    %321 = vmatpush2.msra.mxu0 0.0
    %322 = vmatprep.subr.mxu0 0.0
    %323 = vmatpush2.msra.mxu0 0.0
    %324 = vmatprep.subr.mxu0 0.0
    %325 = vmatpush2.msra.mxu0 0.0
    %326 = vmatprep.subr.mxu0 0.0
    %327 = vmatpush2.msra.mxu0 0.0
    %328 = vmatprep.subr.mxu0 0.0
    %329 = vmatpush2.msra.mxu0 0.0
    %330 = vmatprep.subr.mxu0 0.0
    %331 = vmatpush2.msra.mxu0 0.0
    %332 = vmatprep.subr.mxu0 0.0
    %333 = vmatpush2.msra.mxu0 0.0
    %334 = vmatprep.subr.mxu0 0.0
    %335 = vmatpush2.msra.mxu0 0.0
    %336 = vmatprep.subr.mxu0 0.0
    %337 = vmatpush2.msra.mxu0 0.0
    %338 = vmatprep.subr.mxu0 0.0
    %339 = vmatpush2.msra.mxu0 0.0
    %340 = vmatprep.subr.mxu0 0.0
    %341 = vmatpush2.msra.mxu0 0.0
    %342 = vmatprep.subr.mxu0 0.0
    %343 = vmatpush2.msra.mxu0 0.0
    %344 = vmatprep.subr.mxu0 0.0
    %345 = vmatpush2.msra.mxu0 0.0
    %346 = vmatprep.mubr.f32.mxu0 0.0
    %347 = vmatmul.mubr.f32.gmra.mxu0 %v277
    %v348 = vpop.f32.mrf.mxu0
    %v349 = vadd.f32 %v249, %v348
    %v350 = vpop.f32.mrf.mxu0
    %v351 = vadd.f32 %v253, %v350
    %352 = vmatprep.mubr.f32.mxu0 0.0
    %353 = vmatmul.mubr.f32.gmra.mxu0 %v280
    %v354 = vpop.f32.mrf.mxu0
    %v355 = vadd.f32 %v249, %v354
    %v356 = vpop.f32.mrf.mxu0
    %v357 = vadd.f32 %v253, %v356
    %358 = vdwg.mxu0
    %359 = vmatprep.subr.mxu0 0.0
    %360 = vmatpush1.msra.mxu0 0.0
    %361 = vmatprep.subr.mxu0 0.0
    %362 = vmatpush1.msra.mxu0 0.0
    %363 = vmatprep.subr.mxu0 0.0
    %364 = vmatpush1.msra.mxu0 0.0
    %365 = vmatprep.subr.mxu0 0.0
    %366 = vmatpush1.msra.mxu0 0.0
    %367 = vmatprep.subr.mxu0 0.0
    %368 = vmatpush1.msra.mxu0 0.0
    %369 = vmatprep.subr.mxu0 0.0
    %370 = vmatpush1.msra.mxu0 0.0
    %371 = vmatprep.subr.mxu0 0.0
    %372 = vmatpush1.msra.mxu0 0.0
    %373 = vmatprep.subr.mxu0 0.0
    %374 = vmatpush1.msra.mxu0 0.0
    %375 = vmatprep.subr.mxu0 0.0
    %376 = vmatpush1.msra.mxu0 0.0
    %377 = vmatprep.subr.mxu0 0.0
    %378 = vmatpush1.msra.mxu0 0.0
    %379 = vmatprep.subr.mxu0 0.0
    %380 = vmatpush1.msra.mxu0 0.0
    %381 = vmatprep.subr.mxu0 0.0
    %382 = vmatpush1.msra.mxu0 0.0
    %383 = vmatprep.subr.mxu0 %v241
    %384 = vmatpush1.msra.mxu0 %v240
    %385 = vmatprep.subr.mxu0 %v235
    %386 = vmatpush1.msra.mxu0 %v234
    %387 = vmatprep.subr.mxu0 %v229
    %388 = vmatpush1.msra.mxu0 %v228
    %389 = vmatprep.subr.mxu0 %v223
    %390 = vmatpush1.msra.mxu0 %v222
    %391 = vmatprep.subr.mxu0 0.0
    %392 = vmatpush2.msra.mxu0 0.0
    %393 = vmatprep.subr.mxu0 0.0
    %394 = vmatpush2.msra.mxu0 0.0
    %395 = vmatprep.subr.mxu0 0.0
    %396 = vmatpush2.msra.mxu0 0.0
    %397 = vmatprep.subr.mxu0 0.0
    %398 = vmatpush2.msra.mxu0 0.0
    %399 = vmatprep.subr.mxu0 0.0
    %400 = vmatpush2.msra.mxu0 0.0
    %401 = vmatprep.subr.mxu0 0.0
    %402 = vmatpush2.msra.mxu0 0.0
    %403 = vmatprep.subr.mxu0 0.0
    %404 = vmatpush2.msra.mxu0 0.0
    %405 = vmatprep.subr.mxu0 0.0
    %406 = vmatpush2.msra.mxu0 0.0
    %407 = vmatprep.subr.mxu0 0.0
    %408 = vmatpush2.msra.mxu0 0.0
    %409 = vmatprep.subr.mxu0 0.0
    %410 = vmatpush2.msra.mxu0 0.0
    %411 = vmatprep.subr.mxu0 0.0
    %412 = vmatpush2.msra.mxu0 0.0
    %413 = vmatprep.subr.mxu0 0.0
    %414 = vmatpush2.msra.mxu0 0.0
    %415 = vmatprep.subr.mxu0 0.0
    %416 = vmatpush2.msra.mxu0 0.0
    %417 = vmatprep.subr.mxu0 0.0
    %418 = vmatpush2.msra.mxu0 0.0
    %419 = vmatprep.subr.mxu0 0.0
    %420 = vmatpush2.msra.mxu0 0.0
    %421 = vmatprep.subr.mxu0 0.0
    %422 = vmatpush2.msra.mxu0 0.0
    %423 = vmatprep.mubr.f32.mxu0 0.0
    %424 = vmatmul.mubr.f32.gmra.mxu0 %v277
    %v425 = vpop.f32.mrf.mxu0
    %v426 = vadd.f32 %v257, %v425
    %v427 = vpop.f32.mrf.mxu0
    %v428 = vadd.f32 %v261, %v427
    %429 = vmatprep.mubr.f32.mxu0 0.0
    %430 = vmatmul.mubr.f32.gmra.mxu0 %v280
    %v431 = vpop.f32.mrf.mxu0
    %v432 = vadd.f32 %v257, %v431
    %v433 = vpop.f32.mrf.mxu0
    %v434 = vadd.f32 %v261, %v433
    %435 = vdwg.mxu0
    %436 = vmatprep.subr.mxu0 0.0
    %437 = vmatpush1.msra.mxu0 0.0
    %438 = vmatprep.subr.mxu0 0.0
    %439 = vmatpush1.msra.mxu0 0.0
    %440 = vmatprep.subr.mxu0 0.0
    %441 = vmatpush1.msra.mxu0 0.0
    %442 = vmatprep.subr.mxu0 0.0
    %443 = vmatpush1.msra.mxu0 0.0
    %444 = vmatprep.subr.mxu0 0.0
    %445 = vmatpush1.msra.mxu0 0.0
    %446 = vmatprep.subr.mxu0 0.0
    %447 = vmatpush1.msra.mxu0 0.0
    %448 = vmatprep.subr.mxu0 0.0
    %449 = vmatpush1.msra.mxu0 0.0
    %450 = vmatprep.subr.mxu0 0.0
    %451 = vmatpush1.msra.mxu0 0.0
    %452 = vmatprep.subr.mxu0 0.0
    %453 = vmatpush1.msra.mxu0 0.0
    %454 = vmatprep.subr.mxu0 0.0
    %455 = vmatpush1.msra.mxu0 0.0
    %456 = vmatprep.subr.mxu0 0.0
    %457 = vmatpush1.msra.mxu0 0.0
    %458 = vmatprep.subr.mxu0 0.0
    %459 = vmatpush1.msra.mxu0 0.0
    %460 = vmatprep.subr.mxu0 %v243
    %461 = vmatpush1.msra.mxu0 %v242
    %462 = vmatprep.subr.mxu0 %v237
    %463 = vmatpush1.msra.mxu0 %v236
    %464 = vmatprep.subr.mxu0 %v231
    %465 = vmatpush1.msra.mxu0 %v230
    %466 = vmatprep.subr.mxu0 %v225
    %467 = vmatpush1.msra.mxu0 %v224
    %468 = vmatprep.subr.mxu0 0.0
    %469 = vmatpush2.msra.mxu0 0.0
    %470 = vmatprep.subr.mxu0 0.0
    %471 = vmatpush2.msra.mxu0 0.0
    %472 = vmatprep.subr.mxu0 0.0
    %473 = vmatpush2.msra.mxu0 0.0
    %474 = vmatprep.subr.mxu0 0.0
    %475 = vmatpush2.msra.mxu0 0.0
    %476 = vmatprep.subr.mxu0 0.0
    %477 = vmatpush2.msra.mxu0 0.0
    %478 = vmatprep.subr.mxu0 0.0
    %479 = vmatpush2.msra.mxu0 0.0
    %480 = vmatprep.subr.mxu0 0.0
    %481 = vmatpush2.msra.mxu0 0.0
    %482 = vmatprep.subr.mxu0 0.0
    %483 = vmatpush2.msra.mxu0 0.0
    %484 = vmatprep.subr.mxu0 0.0
    %485 = vmatpush2.msra.mxu0 0.0
    %486 = vmatprep.subr.mxu0 0.0
    %487 = vmatpush2.msra.mxu0 0.0
    %488 = vmatprep.subr.mxu0 0.0
    %489 = vmatpush2.msra.mxu0 0.0
    %490 = vmatprep.subr.mxu0 0.0
    %491 = vmatpush2.msra.mxu0 0.0
    %492 = vmatprep.subr.mxu0 0.0
    %493 = vmatpush2.msra.mxu0 0.0
    %494 = vmatprep.subr.mxu0 0.0
    %495 = vmatpush2.msra.mxu0 0.0
    %496 = vmatprep.subr.mxu0 0.0
    %497 = vmatpush2.msra.mxu0 0.0
    %498 = vmatprep.subr.mxu0 0.0
    %499 = vmatpush2.msra.mxu0 0.0
    %500 = vmatprep.mubr.f32.mxu0 0.0
    %501 = vmatmul.mubr.f32.gmra.mxu0 %v277
    %v502 = vpop.f32.mrf.mxu0
    %v503 = vadd.f32 %v265, %v502
    %v504 = vpop.f32.mrf.mxu0
    %v505 = vadd.f32 %v269, %v504
    %506 = vmatprep.mubr.f32.mxu0 0.0
    %507 = vmatmul.mubr.f32.gmra.mxu0 %v280
    %v508 = vpop.f32.mrf.mxu0
    %v509 = vadd.f32 %v265, %v508
    %v510 = vpop.f32.mrf.mxu0
    %v511 = vadd.f32 %v269, %v510
    %512 = vdwg.mxu0
    %513 = vst [vmem:[#allocation10] sm:$0xff] %v349
    %514 = vst [vmem:[#allocation10 + $0x8] sm:$0xff] %v351
    %515 = vst [vmem:[#allocation10 + $0x10] sm:$0xff] %v426
    %516 = vst [vmem:[#allocation10 + $0x18] sm:$0xff] %v428
    %517 = vst [vmem:[#allocation10 + $0x20] sm:$0xff] %v503
    %518 = vst [vmem:[#allocation10 + $0x28] sm:$0xff] %v505
    %519 = vst [vmem:[#allocation10 + $0x30] sm:$0xff] %v355
    %520 = vst [vmem:[#allocation10 + $0x38] sm:$0xff] %v357
    %521 = vst [vmem:[#allocation10 + $0x40] sm:$0xff] %v432
    %522 = vst [vmem:[#allocation10 + $0x48] sm:$0xff] %v434
    %523 = vst [vmem:[#allocation10 + $0x50] sm:$0xff] %v509
    %524 = vst [vmem:[#allocation10 + $0x58] sm:$0xff] %v511
    // Predicated region
    $region38: #{tpu_custom_call.1} parent=1 // pred_check
      _
    $region39: #{tpu_custom_call.1} parent=1 // pred_check_branch
      %526 = sbr.rel (0) target = $region41
    $region40: #{tpu_custom_call.1} parent=1 // pred_region
      %s528 = ssub.s32 1536, 1536
      %529 = vsyncadd [#allocation4], %s528
      %s530 = sshll.u32 [#allocation10], 4
      %s531 = int_to_ptr.vmem [resolvable:$true] %s530
      %536 = dma.vmem_to_hbm [thread:$0]  %s531, 1536, %s5, [#allocation4], 768, 768, 48
    $region41: #{tpu_custom_call.1} parent=1 // pred_fallthru
      _
    // Predicated region
    $region42: #{tpu_custom_call.1} parent=1 // pred_check
      _
    $region43: #{tpu_custom_call.1} parent=1 // pred_check_branch
      %538 = sbr.rel (0) target = $region45
    $region44: #{tpu_custom_call.1} parent=1 // pred_region
      %539 = dma.done [#allocation4], 1536
    $region45: #{tpu_custom_call.1} parent=1 // pred_fallthru
      _
    %540 = vsyncpa [#allocation3], 1
    %541 = vsyncpa [#allocation6], 1
    %542 = vsyncpa [#allocation9], 1
    %543 = vsyncpa [#allocation4], 1

</llo_original>
